<compile_context>
chip_gen: v5e
topology: v5e:2x2
jax: 0.10.0
libtpu: 0.0.40
codegen_flags: <defaults>
</compile_context>

<pallas_src>
import functools

import jax
import jax.numpy as jnp
from jax.experimental import pallas as pl
from jax.experimental.pallas import tpu as pltpu


# ---------------------------------------------------------------------------
# Kernels
# ---------------------------------------------------------------------------
def _residual_block_ctx_kernel(x_ref, ctx_ref, w0_ref, b0_ref, w1_ref, b1_ref,
                               wc_ref, bc_ref, o_ref):
    x = x_ref[...]                                              # (TM, F) f32
    # pre-activation (VPU, f32)
    h = jnp.maximum(x, 0.0)
    # linear 0: bf16 operands, f32 accumulation on the MXU
    h = jnp.dot(h.astype(jnp.bfloat16), w0_ref[...],
                preferred_element_type=jnp.float32) + b0_ref[...]
    # activation; dropout(p=0.0) == identity
    h = jnp.maximum(h, 0.0)
    # linear 1 (zero-initialized small weights)
    h = jnp.dot(h.astype(jnp.bfloat16), w1_ref[...],
                preferred_element_type=jnp.float32) + b1_ref[...]
    # context gating: glu(cat([h, g], dim=1), dim=1) == h * sigmoid(g)
    g = jnp.dot(ctx_ref[...].astype(jnp.bfloat16), wc_ref[...],
                preferred_element_type=jnp.float32) + bc_ref[...]
    # sigmoid(g) = 1 / (1 + exp(-g)): exp on the EUP, approximate reciprocal on
    # the EUP as well -> no VPU divide.
    sig = pl.reciprocal(1.0 + jnp.exp(-g), approx=True)
    h = h * sig
    # residual connection
    o_ref[...] = (x + h).astype(o_ref.dtype)


def _residual_block_noctx_kernel(x_ref, w0_ref, b0_ref, w1_ref, b1_ref, o_ref):
    x = x_ref[...]
    h = jnp.maximum(x, 0.0)
    h = jnp.dot(h.astype(jnp.bfloat16), w0_ref[...],
                preferred_element_type=jnp.float32) + b0_ref[...]
    h = jnp.maximum(h, 0.0)
    h = jnp.dot(h.astype(jnp.bfloat16), w1_ref[...],
                preferred_element_type=jnp.float32) + b1_ref[...]
    o_ref[...] = (x + h).astype(o_ref.dtype)


# ---------------------------------------------------------------------------
# Tiling / VMEM helpers
# ---------------------------------------------------------------------------
def _vmem_limit_bytes():
    """Per-generation scoped-VMEM cap: generous on v5e/v6e (128 MiB physical),
    conservative elsewhere (v7x has only 64 MiB physical)."""
    try:
        kind = jax.devices()[0].device_kind.lower()
    except Exception:
        kind = ""
    if "v5" in kind or "v6" in kind:
        return 96 << 20
    return 48 << 20


def _pick_tile_m(B, F, C, tile_m):
    """Largest sublane-aligned batch tile that (a) keeps >= 2 grid steps along
    batch whenever the batch allows it (v7x megacore) and (b) keeps the
    double-buffered activation tiles well under the VMEM budget."""
    if B <= 8:
        return B
    # (a) at least two grid steps along batch
    half = -(-B // 2)                 # ceil(B / 2)
    half = -(-half // 8) * 8          # round up to a sublane multiple
    tm = min(tile_m, half)
    # (b) x + out (+ ctx) f32 tiles, double-buffered, under ~24 MiB so the
    # resident weights and pipeline buffers fit every generation's cap.
    bytes_per_row = 2 * (2 * F * 4 + (C or 0) * 4)
    max_rows = (24 << 20) // max(bytes_per_row, 1)
    max_rows = max(8, (max_rows // 8) * 8)
    return max(8, min(tm, max_rows))


# ---------------------------------------------------------------------------
# Wrapper
# ---------------------------------------------------------------------------
def residual_block(x, context, params, *, tile_m=512, alias_input=False,
                   weight_buffer_count=None):
    """x: (B, F) f32; context: (B, C) f32 or None.

    Grid over the batch dimension; weights/biases use constant block indices so
    they stay resident in VMEM across grid steps. No wrapper-side padding: the
    partial last batch tile (if any) is handled by Pallas.

    alias_input=True aliases x to the output (safe: x is read before the output
    is written in every tile) -- use only when the caller donates x.
    weight_buffer_count=1 single-buffers the resident weights; worth it for
    F >= 512 on v7x, left at the Pallas default here.
    """
    w0, b0, w1, b1, wc, bc = params
    B, F = x.shape
    C = context.shape[1] if context is not None else None

    tm = _pick_tile_m(B, F, C, tile_m)
    n_tiles = pl.cdiv(B, tm)          # partial last block handled in-kernel

    if weight_buffer_count is None:
        weight_spec = lambda shape: pl.BlockSpec(shape, lambda i: (0, 0))
    else:
        wmode = pl.Buffered(weight_buffer_count)
        weight_spec = lambda shape: pl.BlockSpec(shape, lambda i: (0, 0),
                                                 pipeline_mode=wmode)

    x_spec = pl.BlockSpec((tm, F), lambda i: (i, 0))
    o_spec = pl.BlockSpec((tm, F), lambda i: (i, 0))

    compiler_params = pltpu.CompilerParams(
        dimension_semantics=("parallel",),   # 2x on v7x megacore, no-op elsewhere
        vmem_limit_bytes=_vmem_limit_bytes(),
    )
    io_aliases = {0: 0} if alias_input else {}

    if context is not None:
        ctx_spec = pl.BlockSpec((tm, C), lambda i: (i, 0))
        cost = pl.CostEstimate(
            flops=2 * B * F * (2 * F + C),
            transcendentals=B * F,           # exp for the sigmoid gate
            bytes_accessed=(x.size + context.size + B * F) * 4    # reads + write
                           + (w0.size + w1.size + wc.size) * 2    # bf16 weights
                           + (b0.size + b1.size + bc.size) * 4,   # f32 biases
        )
        out = pl.pallas_call(
            _residual_block_ctx_kernel,
            out_shape=jax.ShapeDtypeStruct((B, F), x.dtype),
            grid=(n_tiles,),
            in_specs=[
                x_spec, ctx_spec,
                weight_spec(w0.shape), weight_spec(b0.shape),
                weight_spec(w1.shape), weight_spec(b1.shape),
                weight_spec(wc.shape), weight_spec(bc.shape),
            ],
            out_specs=o_spec,
            compiler_params=compiler_params,
            cost_estimate=cost,
            input_output_aliases=io_aliases,
        )(x, context, w0, b0, w1, b1, wc, bc)
    else:
        cost = pl.CostEstimate(
            flops=2 * B * F * (2 * F),
            transcendentals=0,
            bytes_accessed=(x.size + B * F) * 4
                           + (w0.size + w1.size) * 2
                           + (b0.size + b1.size) * 4,
        )
        out = pl.pallas_call(
            _residual_block_noctx_kernel,
            out_shape=jax.ShapeDtypeStruct((B, F), x.dtype),
            grid=(n_tiles,),
            in_specs=[
                x_spec,
                weight_spec(w0.shape), weight_spec(b0.shape),
                weight_spec(w1.shape), weight_spec(b1.shape),
            ],
            out_specs=o_spec,
            compiler_params=compiler_params,
            cost_estimate=cost,
            input_output_aliases=io_aliases,
        )(x, w0, b0, w1, b1)

    return out


# ---------------------------------------------------------------------------
# Parameter init + pure-JAX reference
# ---------------------------------------------------------------------------
def init_params(key, features, context_features):
    """Deterministic synthetic init mirroring the module's shapes.
    Linear weights stored as (in, out) bf16; biases as (1, out) f32."""
    k0, k1, k2, k3, k4, k5 = jax.random.split(key, 6)
    lim = 1.0 / jnp.sqrt(features)
    limc = 1.0 / jnp.sqrt(context_features)
    w0 = jax.random.uniform(k0, (features, features), jnp.float32, -lim, lim)
    b0 = jax.random.uniform(k1, (1, features), jnp.float32, -lim, lim)
    # zero_initialization=True -> last linear ~ U(-0.001, 0.001)
    w1 = jax.random.uniform(k2, (features, features), jnp.float32, -0.001, 0.001)
    b1 = jax.random.uniform(k3, (1, features), jnp.float32, -0.001, 0.001)
    wc = jax.random.uniform(k4, (context_features, features), jnp.float32, -limc, limc)
    bc = jax.random.uniform(k5, (1, features), jnp.float32, -limc, limc)
    return (w0.astype(jnp.bfloat16), b0,
            w1.astype(jnp.bfloat16), b1,
            wc.astype(jnp.bfloat16), bc)


def residual_block_ref(x, context, params):
    """Pure-JAX reference with identical bf16-operand / f32-accumulate math
    (exact sigmoid; the kernel's approximate reciprocal differs by <1e-4)."""
    w0, b0, w1, b1, wc, bc = params
    h = jnp.maximum(x, 0.0)
    h = jnp.dot(h.astype(jnp.bfloat16), w0, preferred_element_type=jnp.float32) + b0
    h = jnp.maximum(h, 0.0)
    h = jnp.dot(h.astype(jnp.bfloat16), w1, preferred_element_type=jnp.float32) + b1
    if context is not None:
        g = jnp.dot(context.astype(jnp.bfloat16), wc,
                    preferred_element_type=jnp.float32) + bc
        h = h * jax.nn.sigmoid(g)
    return x + h


# ---------------------------------------------------------------------------
# Self-test
# ---------------------------------------------------------------------------
if __name__ == "__main__":
    batch = 256                 # -> two 128-row tiles (>= 2 grid steps for v7x)
    features = 128              # lane-dense (multiple of 128)
    context_features = 128

    key = jax.random.PRNGKey(0)
    kx, kc, kp = jax.random.split(key, 3)
    x = jax.random.normal(kx, (batch, features), jnp.float32)
    context = jax.random.normal(kc, (batch, context_features), jnp.float32)
    params = init_params(kp, features, context_features)

    run = jax.jit(functools.partial(residual_block))

    # context path
    out = jax.block_until_ready(run(x, context, params))
    ref = residual_block_ref(x, context, params)
    assert out.shape == (batch, features)
    assert jnp.allclose(out, ref, atol=1e-3, rtol=1e-3), \
        float(jnp.max(jnp.abs(out - ref)))

    # no-context path (context=None in the PyTorch module)
    out_nc = jax.block_until_ready(run(x, None, params))
    ref_nc = residual_block_ref(x, None, params)
    assert jnp.allclose(out_nc, ref_nc, atol=1e-3, rtol=1e-3), \
        float(jnp.max(jnp.abs(out_nc - ref_nc)))

    # ragged batch: exercises the partial last tile (no wrapper-side pad/slice)
    xr, cr = x[:200], context[:200]
    out_r = jax.block_until_ready(run(xr, cr, params))
    ref_r = residual_block_ref(xr, cr, params)
    assert out_r.shape == (200, features)
    assert jnp.allclose(out_r, ref_r, atol=1e-3, rtol=1e-3), \
        float(jnp.max(jnp.abs(out_r - ref_r)))

    print("KERNEL_OK")
</pallas_src>

<mosaic_0001>
module attributes {stable_mosaic.version = 11 : i64} {
  func.func @_residual_block_ctx_kernel(%arg0: i32, %arg1: memref<128x128xf32, #tpu.memory_space<vmem>>, %arg2: memref<128x128xf32, #tpu.memory_space<vmem>>, %arg3: memref<128x128xbf16, #tpu.memory_space<vmem>>, %arg4: memref<1x128xf32, #tpu.memory_space<vmem>>, %arg5: memref<128x128xbf16, #tpu.memory_space<vmem>>, %arg6: memref<1x128xf32, #tpu.memory_space<vmem>>, %arg7: memref<128x128xbf16, #tpu.memory_space<vmem>>, %arg8: memref<1x128xf32, #tpu.memory_space<vmem>>, %arg9: memref<128x128xf32, #tpu.memory_space<vmem>>) attributes {dimension_semantics = [#tpu.dimension_semantics<parallel>], iteration_bounds = array<i64: 2>, scalar_prefetch = 0 : i64, scratch_operands = 0 : i64, tpu.core_type = #tpu.core_type<tc>, window_params = [{transform_indices = @transform_0, window_bounds = array<i64: 128, 128>}, {transform_indices = @transform_1, window_bounds = array<i64: 128, 128>}, {pipeline_mode = #tpu.pipeline_mode<synchronous>, transform_indices = @transform_2, window_bounds = array<i64: 128, 128>}, {pipeline_mode = #tpu.pipeline_mode<synchronous>, transform_indices = @transform_3, window_bounds = array<i64: 1, 128>}, {pipeline_mode = #tpu.pipeline_mode<synchronous>, transform_indices = @transform_4, window_bounds = array<i64: 128, 128>}, {pipeline_mode = #tpu.pipeline_mode<synchronous>, transform_indices = @transform_5, window_bounds = array<i64: 1, 128>}, {pipeline_mode = #tpu.pipeline_mode<synchronous>, transform_indices = @transform_6, window_bounds = array<i64: 128, 128>}, {pipeline_mode = #tpu.pipeline_mode<synchronous>, transform_indices = @transform_7, window_bounds = array<i64: 1, 128>}, {transform_indices = @transform_8, window_bounds = array<i64: 128, 128>}]} {
    %c0 = arith.constant 0 : index
    %c0_0 = arith.constant 0 : index
    %0 = vector.load %arg1[%c0, %c0_0] : memref<128x128xf32, #tpu.memory_space<vmem>>, vector<128x128xf32>
    %cst = arith.constant 0.000000e+00 : f32
    %1 = vector.broadcast %cst : f32 to vector<128x128xf32>
    %2 = arith.maximumf %0, %1 : vector<128x128xf32>
    %3 = arith.truncf %2 : vector<128x128xf32> to vector<128x128xbf16>
    %c0_1 = arith.constant 0 : index
    %c0_2 = arith.constant 0 : index
    %4 = vector.load %arg3[%c0_1, %c0_2] : memref<128x128xbf16, #tpu.memory_space<vmem>>, vector<128x128xbf16>
    %cst_3 = arith.constant dense<0.000000e+00> : vector<128x128xf32>
    %5 = tpu.matmul %3, %4, %cst_3 {dimension_numbers = #tpu.dot_dimension_numbers<[1], [0], [0], [1], [0, 0, 1, 1], [], []>} : vector<128x128xbf16>, vector<128x128xbf16>, vector<128x128xf32> -> vector<128x128xf32>
    %c0_4 = arith.constant 0 : index
    %c0_5 = arith.constant 0 : index
    %6 = vector.load %arg4[%c0_4, %c0_5] : memref<1x128xf32, #tpu.memory_space<vmem>>, vector<1x128xf32>
    %7 = vector.broadcast %6 : vector<1x128xf32> to vector<128x128xf32>
    %8 = arith.addf %5, %7 : vector<128x128xf32>
    %cst_6 = arith.constant 0.000000e+00 : f32
    %9 = vector.broadcast %cst_6 : f32 to vector<128x128xf32>
    %10 = arith.maximumf %8, %9 : vector<128x128xf32>
    %11 = arith.truncf %10 : vector<128x128xf32> to vector<128x128xbf16>
    %c0_7 = arith.constant 0 : index
    %c0_8 = arith.constant 0 : index
    %12 = vector.load %arg5[%c0_7, %c0_8] : memref<128x128xbf16, #tpu.memory_space<vmem>>, vector<128x128xbf16>
    %cst_9 = arith.constant dense<0.000000e+00> : vector<128x128xf32>
    %13 = tpu.matmul %11, %12, %cst_9 {dimension_numbers = #tpu.dot_dimension_numbers<[1], [0], [0], [1], [0, 0, 1, 1], [], []>} : vector<128x128xbf16>, vector<128x128xbf16>, vector<128x128xf32> -> vector<128x128xf32>
    %c0_10 = arith.constant 0 : index
    %c0_11 = arith.constant 0 : index
    %14 = vector.load %arg6[%c0_10, %c0_11] : memref<1x128xf32, #tpu.memory_space<vmem>>, vector<1x128xf32>
    %15 = vector.broadcast %14 : vector<1x128xf32> to vector<128x128xf32>
    %16 = arith.addf %13, %15 : vector<128x128xf32>
    %c0_12 = arith.constant 0 : index
    %c0_13 = arith.constant 0 : index
    %17 = vector.load %arg2[%c0_12, %c0_13] : memref<128x128xf32, #tpu.memory_space<vmem>>, vector<128x128xf32>
    %18 = arith.truncf %17 : vector<128x128xf32> to vector<128x128xbf16>
    %c0_14 = arith.constant 0 : index
    %c0_15 = arith.constant 0 : index
    %19 = vector.load %arg7[%c0_14, %c0_15] : memref<128x128xbf16, #tpu.memory_space<vmem>>, vector<128x128xbf16>
    %cst_16 = arith.constant dense<0.000000e+00> : vector<128x128xf32>
    %20 = tpu.matmul %18, %19, %cst_16 {dimension_numbers = #tpu.dot_dimension_numbers<[1], [0], [0], [1], [0, 0, 1, 1], [], []>} : vector<128x128xbf16>, vector<128x128xbf16>, vector<128x128xf32> -> vector<128x128xf32>
    %c0_17 = arith.constant 0 : index
    %c0_18 = arith.constant 0 : index
    %21 = vector.load %arg8[%c0_17, %c0_18] : memref<1x128xf32, #tpu.memory_space<vmem>>, vector<1x128xf32>
    %22 = vector.broadcast %21 : vector<1x128xf32> to vector<128x128xf32>
    %23 = arith.addf %20, %22 : vector<128x128xf32>
    %cst_19 = arith.constant 0.000000e+00 : f32
    %24 = vector.broadcast %cst_19 : f32 to vector<128x128xf32>
    %25 = arith.subf %24, %23 : vector<128x128xf32>
    %26 = math.exp %25 : vector<128x128xf32>
    %cst_20 = arith.constant 1.000000e+00 : f32
    %27 = vector.broadcast %cst_20 : f32 to vector<128x128xf32>
    %28 = arith.addf %27, %26 : vector<128x128xf32>
    %29 = tpu.reciprocal %28 {approx = true} : vector<128x128xf32> -> vector<128x128xf32>
    %30 = arith.mulf %16, %29 : vector<128x128xf32>
    %31 = arith.addf %0, %30 : vector<128x128xf32>
    %c0_21 = arith.constant 0 : index
    %c0_22 = arith.constant 0 : index
    %32 = vector.load %arg9[%c0_21, %c0_22] : memref<128x128xf32, #tpu.memory_space<vmem>>, vector<128x128xf32>
    tpu.vector_store %arg9[%c0_21, %c0_22], %31 {strides = array<i32>} : memref<128x128xf32, #tpu.memory_space<vmem>>, vector<128x128xf32>,
    return
  }
  func.func @transform_0(%arg0: i32) -> (i32, i32) {
    %c0_i32 = arith.constant 0 : i32
    %c0_i32_0 = arith.constant 0 : i32
    return %arg0, %c0_i32 : i32, i32
  }
  func.func @transform_1(%arg0: i32) -> (i32, i32) {
    %c0_i32 = arith.constant 0 : i32
    %c0_i32_0 = arith.constant 0 : i32
    return %arg0, %c0_i32 : i32, i32
  }
  func.func @transform_2(%arg0: i32) -> (i32, i32) {
    %c0_i32 = arith.constant 0 : i32
    %c0_i32_0 = arith.constant 0 : i32
    %c0_i32_1 = arith.constant 0 : i32
    return %c0_i32, %c0_i32_0 : i32, i32
  }
  func.func @transform_3(%arg0: i32) -> (i32, i32) {
    %c0_i32 = arith.constant 0 : i32
    %c0_i32_0 = arith.constant 0 : i32
    %c0_i32_1 = arith.constant 0 : i32
    return %c0_i32, %c0_i32_0 : i32, i32
  }
  func.func @transform_4(%arg0: i32) -> (i32, i32) {
    %c0_i32 = arith.constant 0 : i32
    %c0_i32_0 = arith.constant 0 : i32
    %c0_i32_1 = arith.constant 0 : i32
    return %c0_i32, %c0_i32_0 : i32, i32
  }
  func.func @transform_5(%arg0: i32) -> (i32, i32) {
    %c0_i32 = arith.constant 0 : i32
    %c0_i32_0 = arith.constant 0 : i32
    %c0_i32_1 = arith.constant 0 : i32
    return %c0_i32, %c0_i32_0 : i32, i32
  }
  func.func @transform_6(%arg0: i32) -> (i32, i32) {
    %c0_i32 = arith.constant 0 : i32
    %c0_i32_0 = arith.constant 0 : i32
    %c0_i32_1 = arith.constant 0 : i32
    return %c0_i32, %c0_i32_0 : i32, i32
  }
  func.func @transform_7(%arg0: i32) -> (i32, i32) {
    %c0_i32 = arith.constant 0 : i32
    %c0_i32_0 = arith.constant 0 : i32
    %c0_i32_1 = arith.constant 0 : i32
    return %c0_i32, %c0_i32_0 : i32, i32
  }
  func.func @transform_8(%arg0: i32) -> (i32, i32) {
    %c0_i32 = arith.constant 0 : i32
    %c0_i32_0 = arith.constant 0 : i32
    return %arg0, %c0_i32 : i32, i32
  }
}

</mosaic_0001>

<llo_original>
// kernel: residual_block.1
$region0: #{residual_block.1}
  #allocation0 [shape = 'u32[]', space=smem, size = 0x4, offset = 0x4, fixed_abs, tag = 'smem constant byte address 0x4 - core index']
  #allocation1 [shape = 'u32[72,128]{1,0:T(1,128)}', space=vmem, size = 0x9000, scoped, tag = 'internal scratch']
  %s0 = inlined_call_operand.hbm [shape: f32[256,128], index: 0, kind: input, shape index: {}]
  %s1 = inlined_call_operand.hbm [shape: f32[256,128], index: 1, kind: input, shape index: {}]
  %s2 = inlined_call_operand.hbm [shape: bf16[128,128], index: 2, kind: input, shape index: {}]
  %s3 = inlined_call_operand.vmem [shape: f32[1,128], index: 3, kind: input, shape index: {}]
  %s4 = inlined_call_operand.hbm [shape: bf16[128,128], index: 4, kind: input, shape index: {}]
  %s5 = inlined_call_operand.vmem [shape: f32[1,128], index: 5, kind: input, shape index: {}]
  %s6 = inlined_call_operand.hbm [shape: bf16[128,128], index: 6, kind: input, shape index: {}]
  %s7 = inlined_call_operand.vmem [shape: f32[1,128], index: 7, kind: input, shape index: {}]
  %s8 = inlined_call_operand.hbm [shape: f32[256,128], index: 8, kind: output, shape index: {}]
  %s9 = sld [smem:[#allocation0]]
  $region85: #{residual_block.1} parent=0
    _
  %s11 = ssub.s32 1, %s9
  %s12 = scalar_select 0, %s11, %s9
  $region1: #{residual_block.1} parent=0
    #allocation2 [shape = 'u8[131072]{0}', space=vmem, size = 0x20000, scoped, tag = 'input window, operand 0']
    #allocation3 [shape = 's32[2]{0}', space=sflag, size = 0x8, scoped, tag = 'scoped memory for residual_block.1']
    #allocation4 [shape = 's32[2]{0}', space=sflag, size = 0x8, scoped, tag = 'scoped memory for residual_block.1']
    #allocation5 [shape = 'u8[131072]{0}', space=vmem, size = 0x20000, scoped, tag = 'input window, operand 1']
    #allocation6 [shape = 's32[2]{0}', space=sflag, size = 0x8, scoped, tag = 'scoped memory for residual_block.1']
    #allocation7 [shape = 'u8[32768]{0}', space=vmem, size = 0x8000, scoped, tag = 'input window, operand 2, single buffered']
    #allocation8 [shape = 'u8[32768]{0}', space=vmem, size = 0x8000, scoped, tag = 'input window, operand 4, single buffered']
    #allocation9 [shape = 's32[1]{0}', space=sflag, size = 0x4, scoped, tag = 'scoped memory for residual_block.1']
    #allocation10 [shape = 'u8[32768]{0}', space=vmem, size = 0x8000, scoped, tag = 'input window, operand 6, single buffered']
    #allocation11 [shape = 'u8[131072]{0}', space=vmem, size = 0x20000, scoped, tag = 'output window, operand 0']
    %13 = vsyncpa [#allocation3], 0
    %s14 = scalar_lea.sflag [#allocation3], 1
    %15 = vsyncpa %s14, 0
    %16 = vsyncpa [#allocation6], 0
    %s17 = scalar_lea.sflag [#allocation6], 1
    %18 = vsyncpa %s17, 0
    %19 = vsyncpa [#allocation9], 0
    %20 = vsyncpa [#allocation4], 0
    %s21 = scalar_lea.sflag [#allocation4], 1
    %22 = vsyncpa %s21, 0
    loop: start=0, step=1, limit=4
    $region2: #{residual_block.1} parent=1 // loop_pre_header
      _
    $region3: #{residual_block.1} parent=1 // loop_header
      %s24 = sphi 0, %s28
      %p25 = scmp.ge.s32.totalorder %s24, 4
      %s34 = sphi 0, %s36
      %s37 = sphi 0, %s34
      %s38 = sphi 0, %s37
      %s54 = sphi 0, %s38
      %s60 = sphi 0, %s62
      %s63 = sphi 0, %s60
      %s64 = sphi 0, %s63
      %s80 = sphi 0, %s64
      %s84 = sphi 0, %s84
      %s86 = sphi 0, %s84
      %s87 = sphi 0, %s86
      %s101 = sphi 0, %s87
      %s105 = sphi 0, %s105
      %s107 = sphi 0, %s105
      %s108 = sphi 0, %s107
      %s122 = sphi 0, %s108
      %s126 = sphi 0, %s126
      %s128 = sphi 0, %s126
      %s129 = sphi 0, %s128
      %s143 = sphi 0, %s129
      %s147 = sphi 0, %s147
      %s149 = sphi 0, %s147
      %s150 = sphi 0, %s149
      %s164 = sphi 0, %s150
      %s168 = sphi 0, %s168
      %s170 = sphi 0, %s168
      %s171 = sphi 0, %s170
      %s185 = sphi 0, %s171
      %s189 = sphi 0, %s189
      %s191 = sphi 0, %s189
      %s192 = sphi 0, %s191
      %s206 = sphi 0, %s192
      %s212 = sphi 0, %s214
      %s215 = sphi 0, %s212
      %s216 = sphi 0, %s215
      %s232 = sphi 0, %s216
    $region4: #{residual_block.1} parent=1 // loop_header_branch
      %27 = sbr.rel (%p25) target = $region8
    $region5: #{residual_block.1} parent=1 // loop_body
      %s29 = ssub.s32 %s24, 1
      %s30 = ssub.s32 %s24, 2
      %s31 = sadd.s32 %s24, 1
      %s32 = ssub.s32 %s24, %s31
      %p33 = scmp.eq.s32.totalorder %s32, 0
      %s35 = sadd.s32 %s34, 1
      %s36 = scalar_select %p33, %s34, %s35
      %p39 = pneg %p33
      %p40 = scmp.eq.s32.totalorder %s24, 1
      %p41 = por %p39, %p40
      %p42 = scmp.ne.s32.totalorder %s34, %s37
      %p43 = scmp.eq.s32.totalorder %s24, 0
      %p44 = por %p42, %p43
      %p45 = scmp.ne.s32.totalorder %s34, %s37
      %p46 = scmp.eq.s32.totalorder %s29, 1
      %p47 = por %p45, %p46
      %p48 = scmp.ne.s32.totalorder %s37, %s38
      %p49 = scmp.eq.s32.totalorder %s29, 0
      %p50 = por %p48, %p49
      %p51 = scmp.ne.s32.totalorder %s37, %s38
      %p52 = scmp.eq.s32.totalorder %s30, 1
      %p53 = por %p51, %p52
      %p55 = scmp.ne.s32.totalorder %s38, %s54
      %p56 = scmp.eq.s32.totalorder %s30, 0
      %p57 = por %p55, %p56
      %s58 = ssub.s32 %s24, %s31
      %p59 = scmp.eq.s32.totalorder %s58, 0
      %s61 = sadd.s32 %s60, 1
      %s62 = scalar_select %p59, %s60, %s61
      %p65 = pneg %p59
      %p66 = scmp.eq.s32.totalorder %s24, 1
      %p67 = por %p65, %p66
      %p68 = scmp.ne.s32.totalorder %s60, %s63
      %p69 = scmp.eq.s32.totalorder %s24, 0
      %p70 = por %p68, %p69
      %p71 = scmp.ne.s32.totalorder %s60, %s63
      %p72 = scmp.eq.s32.totalorder %s29, 1
      %p73 = por %p71, %p72
      %p74 = scmp.ne.s32.totalorder %s63, %s64
      %p75 = scmp.eq.s32.totalorder %s29, 0
      %p76 = por %p74, %p75
      %p77 = scmp.ne.s32.totalorder %s63, %s64
      %p78 = scmp.eq.s32.totalorder %s30, 1
      %p79 = por %p77, %p78
      %p81 = scmp.ne.s32.totalorder %s64, %s80
      %p82 = scmp.eq.s32.totalorder %s30, 0
      %p83 = por %p81, %p82
      %s85 = sadd.s32 %s84, 1
      %p88 = scmp.eq.s32.totalorder %s24, 1
      %p89 = scmp.ne.s32.totalorder %s84, %s86
      %p90 = scmp.eq.s32.totalorder %s24, 0
      %p91 = por %p89, %p90
      %p92 = scmp.ne.s32.totalorder %s84, %s86
      %p93 = scmp.eq.s32.totalorder %s29, 1
      %p94 = por %p92, %p93
      %p95 = scmp.ne.s32.totalorder %s86, %s87
      %p96 = scmp.eq.s32.totalorder %s29, 0
      %p97 = por %p95, %p96
      %p98 = scmp.ne.s32.totalorder %s86, %s87
      %p99 = scmp.eq.s32.totalorder %s30, 1
      %p100 = por %p98, %p99
      %p102 = scmp.ne.s32.totalorder %s87, %s101
      %p103 = scmp.eq.s32.totalorder %s30, 0
      %p104 = por %p102, %p103
      %s106 = sadd.s32 %s105, 1
      %p109 = scmp.eq.s32.totalorder %s24, 1
      %p110 = scmp.ne.s32.totalorder %s105, %s107
      %p111 = scmp.eq.s32.totalorder %s24, 0
      %p112 = por %p110, %p111
      %p113 = scmp.ne.s32.totalorder %s105, %s107
      %p114 = scmp.eq.s32.totalorder %s29, 1
      %p115 = por %p113, %p114
      %p116 = scmp.ne.s32.totalorder %s107, %s108
      %p117 = scmp.eq.s32.totalorder %s29, 0
      %p118 = por %p116, %p117
      %p119 = scmp.ne.s32.totalorder %s107, %s108
      %p120 = scmp.eq.s32.totalorder %s30, 1
      %p121 = por %p119, %p120
      %p123 = scmp.ne.s32.totalorder %s108, %s122
      %p124 = scmp.eq.s32.totalorder %s30, 0
      %p125 = por %p123, %p124
      %s127 = sadd.s32 %s126, 1
      %p130 = scmp.eq.s32.totalorder %s24, 1
      %p131 = scmp.ne.s32.totalorder %s126, %s128
      %p132 = scmp.eq.s32.totalorder %s24, 0
      %p133 = por %p131, %p132
      %p134 = scmp.ne.s32.totalorder %s126, %s128
      %p135 = scmp.eq.s32.totalorder %s29, 1
      %p136 = por %p134, %p135
      %p137 = scmp.ne.s32.totalorder %s128, %s129
      %p138 = scmp.eq.s32.totalorder %s29, 0
      %p139 = por %p137, %p138
      %p140 = scmp.ne.s32.totalorder %s128, %s129
      %p141 = scmp.eq.s32.totalorder %s30, 1
      %p142 = por %p140, %p141
      %p144 = scmp.ne.s32.totalorder %s129, %s143
      %p145 = scmp.eq.s32.totalorder %s30, 0
      %p146 = por %p144, %p145
      %s148 = sadd.s32 %s147, 1
      %p151 = scmp.eq.s32.totalorder %s24, 1
      %p152 = scmp.ne.s32.totalorder %s147, %s149
      %p153 = scmp.eq.s32.totalorder %s24, 0
      %p154 = por %p152, %p153
      %p155 = scmp.ne.s32.totalorder %s147, %s149
      %p156 = scmp.eq.s32.totalorder %s29, 1
      %p157 = por %p155, %p156
      %p158 = scmp.ne.s32.totalorder %s149, %s150
      %p159 = scmp.eq.s32.totalorder %s29, 0
      %p160 = por %p158, %p159
      %p161 = scmp.ne.s32.totalorder %s149, %s150
      %p162 = scmp.eq.s32.totalorder %s30, 1
      %p163 = por %p161, %p162
      %p165 = scmp.ne.s32.totalorder %s150, %s164
      %p166 = scmp.eq.s32.totalorder %s30, 0
      %p167 = por %p165, %p166
      %s169 = sadd.s32 %s168, 1
      %p172 = scmp.eq.s32.totalorder %s24, 1
      %p173 = scmp.ne.s32.totalorder %s168, %s170
      %p174 = scmp.eq.s32.totalorder %s24, 0
      %p175 = por %p173, %p174
      %p176 = scmp.ne.s32.totalorder %s168, %s170
      %p177 = scmp.eq.s32.totalorder %s29, 1
      %p178 = por %p176, %p177
      %p179 = scmp.ne.s32.totalorder %s170, %s171
      %p180 = scmp.eq.s32.totalorder %s29, 0
      %p181 = por %p179, %p180
      %p182 = scmp.ne.s32.totalorder %s170, %s171
      %p183 = scmp.eq.s32.totalorder %s30, 1
      %p184 = por %p182, %p183
      %p186 = scmp.ne.s32.totalorder %s171, %s185
      %p187 = scmp.eq.s32.totalorder %s30, 0
      %p188 = por %p186, %p187
      %s190 = sadd.s32 %s189, 1
      %p193 = scmp.eq.s32.totalorder %s24, 1
      %p194 = scmp.ne.s32.totalorder %s189, %s191
      %p195 = scmp.eq.s32.totalorder %s24, 0
      %p196 = por %p194, %p195
      %p197 = scmp.ne.s32.totalorder %s189, %s191
      %p198 = scmp.eq.s32.totalorder %s29, 1
      %p199 = por %p197, %p198
      %p200 = scmp.ne.s32.totalorder %s191, %s192
      %p201 = scmp.eq.s32.totalorder %s29, 0
      %p202 = por %p200, %p201
      %p203 = scmp.ne.s32.totalorder %s191, %s192
      %p204 = scmp.eq.s32.totalorder %s30, 1
      %p205 = por %p203, %p204
      %p207 = scmp.ne.s32.totalorder %s192, %s206
      %p208 = scmp.eq.s32.totalorder %s30, 0
      %p209 = por %p207, %p208
      %s210 = ssub.s32 %s24, %s31
      %p211 = scmp.eq.s32.totalorder %s210, 0
      %s213 = sadd.s32 %s212, 1
      %s214 = scalar_select %p211, %s212, %s213
      %p217 = pneg %p211
      %p218 = scmp.eq.s32.totalorder %s24, 1
      %p219 = por %p217, %p218
      %p220 = scmp.ne.s32.totalorder %s212, %s215
      %p221 = scmp.eq.s32.totalorder %s24, 0
      %p222 = por %p220, %p221
      %p223 = scmp.ne.s32.totalorder %s212, %s215
      %p224 = scmp.eq.s32.totalorder %s29, 1
      %p225 = por %p223, %p224
      %p226 = scmp.ne.s32.totalorder %s215, %s216
      %p227 = scmp.eq.s32.totalorder %s29, 0
      %p228 = por %p226, %p227
      %p229 = scmp.ne.s32.totalorder %s215, %s216
      %p230 = scmp.eq.s32.totalorder %s30, 1
      %p231 = por %p229, %p230
      %p233 = scmp.ne.s32.totalorder %s216, %s232
      %p234 = scmp.eq.s32.totalorder %s30, 0
      %p235 = por %p233, %p234
      %p236 = scmp.le.s32.totalorder 1, %s24
      %p237 = scmp.lt.s32.totalorder %s24, 3
      %p238 = pnand %p236, %p237
      %p239 = pneg %p238
      // Predicated region
      $region9: #{residual_block.1} parent=5 // pred_check
        _
      $region10: #{residual_block.1} parent=5 // pred_check_branch
        %241 = sbr.rel (%p238) target = $region12
      $region11: #{residual_block.1} parent=5 // pred_region
        %s242 = ssub.s32 %s24, 1
        // Predicated region
        $region13: #{residual_block.1} parent=11 // pred_check
          %p243 = pneg %p97
        $region14: #{residual_block.1} parent=11 // pred_check_branch
          %245 = sbr.rel (%p243) target = $region16
        $region15: #{residual_block.1} parent=11 // pred_region
          %247 = vsyncadd [#allocation6], 0
          %s248 = sshll.u32 %s2, 4
          %s249 = int_to_ptr.hbm [resolvable:$true] %s248
          %s250 = sshll.u32 [#allocation7], 4
          %s251 = int_to_ptr.vmem [resolvable:$true] %s250
          %256 = dma.hbm_to_vmem [thread:$0]  %s249, 1024, %s251, [#allocation6], 64, 64, 4
        $region16: #{residual_block.1} parent=11 // pred_fallthru
          _
        // Predicated region
        $region17: #{residual_block.1} parent=11 // pred_check
          %p257 = pneg %p118
        $region18: #{residual_block.1} parent=11 // pred_check_branch
          %259 = sbr.rel (%p257) target = $region20
        $region19: #{residual_block.1} parent=11 // pred_region
          _
        $region20: #{residual_block.1} parent=11 // pred_fallthru
          _
        // Predicated region
        $region21: #{residual_block.1} parent=11 // pred_check
          %p260 = pneg %p139
        $region22: #{residual_block.1} parent=11 // pred_check_branch
          %262 = sbr.rel (%p260) target = $region24
        $region23: #{residual_block.1} parent=11 // pred_region
          %264 = vsyncadd [#allocation9], 0
          %s265 = sshll.u32 %s4, 4
          %s266 = int_to_ptr.hbm [resolvable:$true] %s265
          %s267 = sshll.u32 [#allocation8], 4
          %s268 = int_to_ptr.vmem [resolvable:$true] %s267
          %273 = dma.hbm_to_vmem [thread:$0]  %s266, 1024, %s268, [#allocation9], 64, 64, 4
        $region24: #{residual_block.1} parent=11 // pred_fallthru
          _
        // Predicated region
        $region25: #{residual_block.1} parent=11 // pred_check
          %p274 = pneg %p160
        $region26: #{residual_block.1} parent=11 // pred_check_branch
          %276 = sbr.rel (%p274) target = $region28
        $region27: #{residual_block.1} parent=11 // pred_region
          _
        $region28: #{residual_block.1} parent=11 // pred_fallthru
          _
        // Predicated region
        $region29: #{residual_block.1} parent=11 // pred_check
          %p277 = pneg %p181
        $region30: #{residual_block.1} parent=11 // pred_check_branch
          %279 = sbr.rel (%p277) target = $region32
        $region31: #{residual_block.1} parent=11 // pred_region
          %281 = vsyncadd [#allocation9], 0
          %s282 = sshll.u32 %s6, 4
          %s283 = int_to_ptr.hbm [resolvable:$true] %s282
          %s284 = sshll.u32 [#allocation10], 4
          %s285 = int_to_ptr.vmem [resolvable:$true] %s284
          %290 = dma.hbm_to_vmem [thread:$0]  %s283, 1024, %s285, [#allocation9], 64, 64, 4
        $region32: #{residual_block.1} parent=11 // pred_fallthru
          _
        // Predicated region
        $region33: #{residual_block.1} parent=11 // pred_check
          %p291 = pneg %p202
        $region34: #{residual_block.1} parent=11 // pred_check_branch
          %293 = sbr.rel (%p291) target = $region36
        $region35: #{residual_block.1} parent=11 // pred_region
          _
        $region36: #{residual_block.1} parent=11 // pred_fallthru
          _
      $region12: #{residual_block.1} parent=5 // pred_fallthru
        _
      %p294 = scmp.lt.s32.totalorder %s24, 2
      // Predicated region
      $region37: #{residual_block.1} parent=5 // pred_check
        %p295 = pneg %p294
      $region38: #{residual_block.1} parent=5 // pred_check_branch
        %297 = sbr.rel (%p295) target = $region40
      $region39: #{residual_block.1} parent=5 // pred_region
        // Predicated region
        $region41: #{residual_block.1} parent=39 // pred_check
          %p298 = pneg %p44
        $region42: #{residual_block.1} parent=39 // pred_check_branch
          %300 = sbr.rel (%p298) target = $region44
        $region43: #{residual_block.1} parent=39 // pred_region
          %s301 = sand.u32 %s34, 1
          %s302 = scalar_lea.sflag [#allocation3], %s301
          %s303 = sand.u32 %s34, 1
          %s304 = smul.addr %s303, 128
          %s305 = scalar_lea.vmem [#allocation2], %s304
          %s306 = smul.u32 16, %s24
          %308 = vsyncadd %s302, 0
          %s309 = smul.addr %s306, 8
          %s310 = scalar_lea.hbm %s0, %s309
          %s311 = sshll.u32 %s310, 4
          %s312 = int_to_ptr.hbm [resolvable:$true] %s311
          %s313 = sshll.u32 %s305, 4
          %s314 = int_to_ptr.vmem [resolvable:$true] %s313
          %319 = dma.hbm_to_vmem [thread:$0]  %s312, 2048, %s314, %s302, 128, 128, 8
        $region44: #{residual_block.1} parent=39 // pred_fallthru
          _
        // Predicated region
        $region45: #{residual_block.1} parent=39 // pred_check
          %p320 = pneg %p70
        $region46: #{residual_block.1} parent=39 // pred_check_branch
          %322 = sbr.rel (%p320) target = $region48
        $region47: #{residual_block.1} parent=39 // pred_region
          %s323 = sand.u32 %s24, 1
          %s324 = scalar_lea.sflag [#allocation6], %s323
          %s325 = sand.u32 %s60, 1
          %s326 = smul.addr %s325, 128
          %s327 = scalar_lea.vmem [#allocation5], %s326
          %s328 = smul.u32 16, %s24
          %330 = vsyncadd %s324, 0
          %s331 = smul.addr %s328, 8
          %s332 = scalar_lea.hbm %s1, %s331
          %s333 = sshll.u32 %s332, 4
          %s334 = int_to_ptr.hbm [resolvable:$true] %s333
          %s335 = sshll.u32 %s327, 4
          %s336 = int_to_ptr.vmem [resolvable:$true] %s335
          %341 = dma.hbm_to_vmem [thread:$0]  %s334, 2048, %s336, %s324, 128, 128, 8
        $region48: #{residual_block.1} parent=39 // pred_fallthru
          _
      $region40: #{residual_block.1} parent=5 // pred_fallthru
        _
      %p342 = scmp.le.s32.totalorder 1, %s24
      %p343 = scmp.lt.s32.totalorder %s24, 3
      %p344 = pnand %p342, %p343
      %p345 = pneg %p344
      // Predicated region
      $region49: #{residual_block.1} parent=5 // pred_check
        _
      $region50: #{residual_block.1} parent=5 // pred_check_branch
        %347 = sbr.rel (%p344) target = $region52
      $region51: #{residual_block.1} parent=5 // pred_region
        %s348 = ssub.s32 %s24, 1
        %s349 = sand.u32 %s37, 1
        %s350 = scalar_lea.sflag [#allocation3], %s349
        %s351 = sand.u32 %s37, 1
        %s352 = smul.addr %s351, 128
        %s353 = scalar_lea.vmem [#allocation2], %s352
        // Predicated region
        $region53: #{residual_block.1} parent=51 // pred_check
          %p354 = pneg %p50
        $region54: #{residual_block.1} parent=51 // pred_check_branch
          %356 = sbr.rel (%p354) target = $region56
        $region55: #{residual_block.1} parent=51 // pred_region
          %358 = dma.done %s350, 2048
        $region56: #{residual_block.1} parent=51 // pred_fallthru
          _
        %s359 = sand.u32 %s29, 1
        %s360 = scalar_lea.sflag [#allocation6], %s359
        %s361 = sand.u32 %s63, 1
        %s362 = smul.addr %s361, 128
        %s363 = scalar_lea.vmem [#allocation5], %s362
        // Predicated region
        $region57: #{residual_block.1} parent=51 // pred_check
          %p364 = pneg %p76
        $region58: #{residual_block.1} parent=51 // pred_check_branch
          %366 = sbr.rel (%p364) target = $region60
        $region59: #{residual_block.1} parent=51 // pred_region
          %368 = dma.done %s360, 2048
        $region60: #{residual_block.1} parent=51 // pred_fallthru
          _
        // Predicated region
        $region61: #{residual_block.1} parent=51 // pred_check
          %p369 = pneg %p97
        $region62: #{residual_block.1} parent=51 // pred_check_branch
          %371 = sbr.rel (%p369) target = $region64
        $region63: #{residual_block.1} parent=51 // pred_region
          %373 = dma.done [#allocation6], 1024
        $region64: #{residual_block.1} parent=51 // pred_fallthru
          _
        // Predicated region
        $region65: #{residual_block.1} parent=51 // pred_check
          %p374 = pneg %p139
        $region66: #{residual_block.1} parent=51 // pred_check_branch
          %376 = sbr.rel (%p374) target = $region68
        $region67: #{residual_block.1} parent=51 // pred_region
          %378 = dma.done [#allocation9], 1024
        $region68: #{residual_block.1} parent=51 // pred_fallthru
          _
        // Predicated region
        $region69: #{residual_block.1} parent=51 // pred_check
          %p379 = pneg %p181
        $region70: #{residual_block.1} parent=51 // pred_check_branch
          %381 = sbr.rel (%p379) target = $region72
        $region71: #{residual_block.1} parent=51 // pred_region
          %383 = dma.done [#allocation9], 1024
        $region72: #{residual_block.1} parent=51 // pred_fallthru
          _
        %s384 = sand.u32 %s37, 1
        %s385 = scalar_lea.sflag [#allocation3], %s384
        %s386 = sand.u32 %s37, 1
        %s387 = smul.addr %s386, 128
        %s388 = scalar_lea.vmem [#allocation2], %s387
        %p389 = pneg %p50
        %p390 = pneg %p47
        %s391 = sand.u32 %s29, 1
        %s392 = scalar_lea.sflag [#allocation6], %s391
        %s393 = sand.u32 %s63, 1
        %s394 = smul.addr %s393, 128
        %s395 = scalar_lea.vmem [#allocation5], %s394
        %p396 = pneg %p76
        %p397 = pneg %p73
        %p398 = pneg %p97
        %p399 = pneg %p94
        %p400 = pneg %p118
        %p401 = pneg %p115
        %p402 = pneg %p139
        %p403 = pneg %p136
        %p404 = pneg %p160
        %p405 = pneg %p157
        %p406 = pneg %p181
        %p407 = pneg %p178
        %p408 = pneg %p202
        %p409 = pneg %p199
        %p410 = pneg %p228
        %p411 = pneg %p225
        %s412 = sand.u32 %s215, 1
        %s413 = scalar_lea.sflag [#allocation4], %s412
        %s414 = sand.u32 %s215, 1
        %s415 = smul.addr %s414, 128
        %s416 = scalar_lea.vmem [#allocation11], %s415
        %s417 = smul.u32 16, %s29
        %s418 = smul.u32 16, %s29
        %s419 = smul.u32 16, %s29
        %v420 = vld [vmem:[%s353] sm:$0xff]
        %v421 = vld [vmem:[%s353 + $0x8] sm:$0xff]
        %v422 = vld [vmem:[%s353 + $0x10] sm:$0xff]
        %v423 = vld [vmem:[%s353 + $0x18] sm:$0xff]
        %v424 = vld [vmem:[%s353 + $0x20] sm:$0xff]
        %v425 = vld [vmem:[%s353 + $0x28] sm:$0xff]
        %v426 = vld [vmem:[%s353 + $0x30] sm:$0xff]
        %v427 = vld [vmem:[%s353 + $0x38] sm:$0xff]
        %v428 = vld [vmem:[%s353 + $0x40] sm:$0xff]
        %v429 = vld [vmem:[%s353 + $0x48] sm:$0xff]
        %v430 = vld [vmem:[%s353 + $0x50] sm:$0xff]
        %v431 = vld [vmem:[%s353 + $0x58] sm:$0xff]
        %v432 = vld [vmem:[%s353 + $0x60] sm:$0xff]
        %v433 = vld [vmem:[%s353 + $0x68] sm:$0xff]
        %v434 = vld [vmem:[%s353 + $0x70] sm:$0xff]
        %v435 = vld [vmem:[%s353 + $0x78] sm:$0xff]
        %v436 = vmax.f32 %v420, 0.0
        %v437 = vmax.f32 %v421, 0.0
        %v438 = vmax.f32 %v422, 0.0
        %v439 = vmax.f32 %v423, 0.0
        %v440 = vmax.f32 %v424, 0.0
        %v441 = vmax.f32 %v425, 0.0
        %v442 = vmax.f32 %v426, 0.0
        %v443 = vmax.f32 %v427, 0.0
        %v444 = vmax.f32 %v428, 0.0
        %v445 = vmax.f32 %v429, 0.0
        %v446 = vmax.f32 %v430, 0.0
        %v447 = vmax.f32 %v431, 0.0
        %v448 = vmax.f32 %v432, 0.0
        %v449 = vmax.f32 %v433, 0.0
        %v450 = vmax.f32 %v434, 0.0
        %v451 = vmax.f32 %v435, 0.0
        %v452 = vpack.c.bf16 %v437, %v436
        %v453 = vpack.c.bf16 %v439, %v438
        %v454 = vpack.c.bf16 %v441, %v440
        %v455 = vpack.c.bf16 %v443, %v442
        %v456 = vpack.c.bf16 %v445, %v444
        %v457 = vpack.c.bf16 %v447, %v446
        %v458 = vpack.c.bf16 %v449, %v448
        %v459 = vpack.c.bf16 %v451, %v450
        %v460 = vld [vmem:[#allocation7] sm:$0xf]
        %v461 = vld [vmem:[#allocation7 + $0x4] sm:$0xf]
        %v462 = vld [vmem:[#allocation7 + $0x8] sm:$0xf]
        %v463 = vld [vmem:[#allocation7 + $0xc] sm:$0xf]
        %v464 = vld [vmem:[#allocation7 + $0x10] sm:$0xf]
        %v465 = vld [vmem:[#allocation7 + $0x14] sm:$0xf]
        %v466 = vld [vmem:[#allocation7 + $0x18] sm:$0xf]
        %v467 = vld [vmem:[#allocation7 + $0x1c] sm:$0xf]
        %v468 = vld [vmem:[#allocation7 + $0x20] sm:$0xf]
        %v469 = vld [vmem:[#allocation7 + $0x24] sm:$0xf]
        %v470 = vld [vmem:[#allocation7 + $0x28] sm:$0xf]
        %v471 = vld [vmem:[#allocation7 + $0x2c] sm:$0xf]
        %v472 = vld [vmem:[#allocation7 + $0x30] sm:$0xf]
        %v473 = vld [vmem:[#allocation7 + $0x34] sm:$0xf]
        %v474 = vld [vmem:[#allocation7 + $0x38] sm:$0xf]
        %v475 = vld [vmem:[#allocation7 + $0x3c] sm:$0xf]
        %v476 = vld [vmem:[%s3] sm:$0x1]
        %v478 = vperm.slane %v476, 0
        %v496 = vunpack.c.l.b16 %v460
        %v497 = vunpack.c.l.b16 %v461
        %v498 = vunpack.c.l.b16 %v462
        %v499 = vunpack.c.l.b16 %v463
        %v500 = vunpack.c.l.b16 %v464
        %v501 = vunpack.c.l.b16 %v465
        %v502 = vunpack.c.l.b16 %v466
        %v503 = vunpack.c.l.b16 %v467
        %v504 = vunpack.c.l.b16 %v468
        %v505 = vunpack.c.l.b16 %v469
        %v506 = vunpack.c.l.b16 %v470
        %v507 = vunpack.c.l.b16 %v471
        %v508 = vunpack.c.l.b16 %v472
        %v509 = vunpack.c.l.b16 %v473
        %v510 = vunpack.c.l.b16 %v474
        %v511 = vunpack.c.l.b16 %v475
        %v512 = vpack.c.b16 %v497, %v496
        %v513 = vpack.c.b16 %v499, %v498
        %v514 = vpack.c.b16 %v501, %v500
        %v515 = vpack.c.b16 %v503, %v502
        %v516 = vpack.c.b16 %v505, %v504
        %v517 = vpack.c.b16 %v507, %v506
        %v518 = vpack.c.b16 %v509, %v508
        %v519 = vpack.c.b16 %v511, %v510
        %528 = vmatpush.bf16.msra.mxu0 %v519
        %529 = vmatpush.bf16.msra.mxu0 %v518
        %530 = vmatpush.bf16.msra.mxu0 %v517
        %531 = vmatpush.bf16.msra.mxu0 %v516
        %532 = vmatpush.bf16.msra.mxu0 %v515
        %533 = vmatpush.bf16.msra.mxu0 %v514
        %534 = vmatpush.bf16.msra.mxu0 %v513
        %535 = vmatpush.bf16.msra.mxu0 %v512
        %536 = vmatmul.bf16.gmra.mxu0 %v452
        %v537 = vpop.f32.mrf.mxu0
        %v538 = vadd.f32 %v478, %v537
        %v539 = vpop.f32.mrf.mxu0
        %v540 = vadd.f32 %v478, %v539
        %541 = vmatmul.bf16.gmra.mxu0 %v453
        %v542 = vpop.f32.mrf.mxu0
        %v543 = vadd.f32 %v478, %v542
        %v544 = vpop.f32.mrf.mxu0
        %v545 = vadd.f32 %v478, %v544
        %546 = vmatmul.bf16.gmra.mxu0 %v454
        %v547 = vpop.f32.mrf.mxu0
        %v548 = vadd.f32 %v478, %v547
        %v549 = vpop.f32.mrf.mxu0
        %v550 = vadd.f32 %v478, %v549
        %551 = vmatmul.bf16.gmra.mxu0 %v455
        %v552 = vpop.f32.mrf.mxu0
        %v553 = vadd.f32 %v478, %v552
        %v554 = vpop.f32.mrf.mxu0
        %v555 = vadd.f32 %v478, %v554
        %556 = vmatmul.bf16.gmra.mxu0 %v456
        %v557 = vpop.f32.mrf.mxu0
        %v558 = vadd.f32 %v478, %v557
        %v559 = vpop.f32.mrf.mxu0
        %v560 = vadd.f32 %v478, %v559
        %561 = vmatmul.bf16.gmra.mxu0 %v457
        %v562 = vpop.f32.mrf.mxu0
        %v563 = vadd.f32 %v478, %v562
        %v564 = vpop.f32.mrf.mxu0
        %v565 = vadd.f32 %v478, %v564
        %566 = vmatmul.bf16.gmra.mxu0 %v458
        %v567 = vpop.f32.mrf.mxu0
        %v568 = vadd.f32 %v478, %v567
        %v569 = vpop.f32.mrf.mxu0
        %v570 = vadd.f32 %v478, %v569
        %571 = vmatmul.bf16.gmra.mxu0 %v459
        %v572 = vpop.f32.mrf.mxu0
        %v573 = vadd.f32 %v478, %v572
        %v574 = vpop.f32.mrf.mxu0
        %v575 = vadd.f32 %v478, %v574
        %576 = vdwg.mxu0
        %v577 = vmax.f32 %v538, 0.0
        %v578 = vmax.f32 %v540, 0.0
        %v579 = vmax.f32 %v543, 0.0
        %v580 = vmax.f32 %v545, 0.0
        %v581 = vmax.f32 %v548, 0.0
        %v582 = vmax.f32 %v550, 0.0
        %v583 = vmax.f32 %v553, 0.0
        %v584 = vmax.f32 %v555, 0.0
        %v585 = vmax.f32 %v558, 0.0
        %v586 = vmax.f32 %v560, 0.0
        %v587 = vmax.f32 %v563, 0.0
        %v588 = vmax.f32 %v565, 0.0
        %v589 = vmax.f32 %v568, 0.0
        %v590 = vmax.f32 %v570, 0.0
        %v591 = vmax.f32 %v573, 0.0
        %v592 = vmax.f32 %v575, 0.0
        %v593 = vpack.c.bf16 %v578, %v577
        %v594 = vpack.c.bf16 %v580, %v579
        %v595 = vpack.c.bf16 %v582, %v581
        %v596 = vpack.c.bf16 %v584, %v583
        %v597 = vpack.c.bf16 %v586, %v585
        %v598 = vpack.c.bf16 %v588, %v587
        %v599 = vpack.c.bf16 %v590, %v589
        %v600 = vpack.c.bf16 %v592, %v591
        %v601 = vld [vmem:[#allocation8] sm:$0xf]
        %v602 = vld [vmem:[#allocation8 + $0x4] sm:$0xf]
        %v603 = vld [vmem:[#allocation8 + $0x8] sm:$0xf]
        %v604 = vld [vmem:[#allocation8 + $0xc] sm:$0xf]
        %v605 = vld [vmem:[#allocation8 + $0x10] sm:$0xf]
        %v606 = vld [vmem:[#allocation8 + $0x14] sm:$0xf]
        %v607 = vld [vmem:[#allocation8 + $0x18] sm:$0xf]
        %v608 = vld [vmem:[#allocation8 + $0x1c] sm:$0xf]
        %v609 = vld [vmem:[#allocation8 + $0x20] sm:$0xf]
        %v610 = vld [vmem:[#allocation8 + $0x24] sm:$0xf]
        %v611 = vld [vmem:[#allocation8 + $0x28] sm:$0xf]
        %v612 = vld [vmem:[#allocation8 + $0x2c] sm:$0xf]
        %v613 = vld [vmem:[#allocation8 + $0x30] sm:$0xf]
        %v614 = vld [vmem:[#allocation8 + $0x34] sm:$0xf]
        %v615 = vld [vmem:[#allocation8 + $0x38] sm:$0xf]
        %v616 = vld [vmem:[#allocation8 + $0x3c] sm:$0xf]
        %v617 = vld [vmem:[%s5] sm:$0x1]
        %v619 = vperm.slane %v617, 0
        %v637 = vunpack.c.l.b16 %v601
        %v638 = vunpack.c.l.b16 %v602
        %v639 = vunpack.c.l.b16 %v603
        %v640 = vunpack.c.l.b16 %v604
        %v641 = vunpack.c.l.b16 %v605
        %v642 = vunpack.c.l.b16 %v606
        %v643 = vunpack.c.l.b16 %v607
        %v644 = vunpack.c.l.b16 %v608
        %v645 = vunpack.c.l.b16 %v609
        %v646 = vunpack.c.l.b16 %v610
        %v647 = vunpack.c.l.b16 %v611
        %v648 = vunpack.c.l.b16 %v612
        %v649 = vunpack.c.l.b16 %v613
        %v650 = vunpack.c.l.b16 %v614
        %v651 = vunpack.c.l.b16 %v615
        %v652 = vunpack.c.l.b16 %v616
        %v653 = vpack.c.b16 %v638, %v637
        %v654 = vpack.c.b16 %v640, %v639
        %v655 = vpack.c.b16 %v642, %v641
        %v656 = vpack.c.b16 %v644, %v643
        %v657 = vpack.c.b16 %v646, %v645
        %v658 = vpack.c.b16 %v648, %v647
        %v659 = vpack.c.b16 %v650, %v649
        %v660 = vpack.c.b16 %v652, %v651
        %669 = vmatpush.bf16.msra.mxu0 %v660
        %670 = vmatpush.bf16.msra.mxu0 %v659
        %671 = vmatpush.bf16.msra.mxu0 %v658
        %672 = vmatpush.bf16.msra.mxu0 %v657
        %673 = vmatpush.bf16.msra.mxu0 %v656
        %674 = vmatpush.bf16.msra.mxu0 %v655
        %675 = vmatpush.bf16.msra.mxu0 %v654
        %676 = vmatpush.bf16.msra.mxu0 %v653
        %677 = vmatmul.bf16.gmra.mxu0 %v593
        %v678 = vpop.f32.mrf.mxu0
        %v679 = vadd.f32 %v619, %v678
        %v680 = vpop.f32.mrf.mxu0
        %v681 = vadd.f32 %v619, %v680
        %682 = vmatmul.bf16.gmra.mxu0 %v594
        %v683 = vpop.f32.mrf.mxu0
        %v684 = vadd.f32 %v619, %v683
        %v685 = vpop.f32.mrf.mxu0
        %v686 = vadd.f32 %v619, %v685
        %687 = vmatmul.bf16.gmra.mxu0 %v595
        %v688 = vpop.f32.mrf.mxu0
        %v689 = vadd.f32 %v619, %v688
        %v690 = vpop.f32.mrf.mxu0
        %v691 = vadd.f32 %v619, %v690
        %692 = vmatmul.bf16.gmra.mxu0 %v596
        %v693 = vpop.f32.mrf.mxu0
        %v694 = vadd.f32 %v619, %v693
        %v695 = vpop.f32.mrf.mxu0
        %v696 = vadd.f32 %v619, %v695
        %697 = vmatmul.bf16.gmra.mxu0 %v597
        %v698 = vpop.f32.mrf.mxu0
        %v699 = vadd.f32 %v619, %v698
        %v700 = vpop.f32.mrf.mxu0
        %v701 = vadd.f32 %v619, %v700
        %702 = vmatmul.bf16.gmra.mxu0 %v598
        %v703 = vpop.f32.mrf.mxu0
        %v704 = vadd.f32 %v619, %v703
        %v705 = vpop.f32.mrf.mxu0
        %v706 = vadd.f32 %v619, %v705
        %707 = vmatmul.bf16.gmra.mxu0 %v599
        %v708 = vpop.f32.mrf.mxu0
        %v709 = vadd.f32 %v619, %v708
        %v710 = vpop.f32.mrf.mxu0
        %v711 = vadd.f32 %v619, %v710
        %712 = vmatmul.bf16.gmra.mxu0 %v600
        %v713 = vpop.f32.mrf.mxu0
        %v714 = vadd.f32 %v619, %v713
        %v715 = vpop.f32.mrf.mxu0
        %v716 = vadd.f32 %v619, %v715
        %717 = vdwg.mxu0
        %v718 = vld [vmem:[%s363] sm:$0xff]
        %v719 = vld [vmem:[%s363 + $0x8] sm:$0xff]
        %v720 = vld [vmem:[%s363 + $0x10] sm:$0xff]
        %v721 = vld [vmem:[%s363 + $0x18] sm:$0xff]
        %v722 = vld [vmem:[%s363 + $0x20] sm:$0xff]
        %v723 = vld [vmem:[%s363 + $0x28] sm:$0xff]
        %v724 = vld [vmem:[%s363 + $0x30] sm:$0xff]
        %v725 = vld [vmem:[%s363 + $0x38] sm:$0xff]
        %v726 = vld [vmem:[%s363 + $0x40] sm:$0xff]
        %v727 = vld [vmem:[%s363 + $0x48] sm:$0xff]
        %v728 = vld [vmem:[%s363 + $0x50] sm:$0xff]
        %v729 = vld [vmem:[%s363 + $0x58] sm:$0xff]
        %v730 = vld [vmem:[%s363 + $0x60] sm:$0xff]
        %v731 = vld [vmem:[%s363 + $0x68] sm:$0xff]
        %v732 = vld [vmem:[%s363 + $0x70] sm:$0xff]
        %v733 = vld [vmem:[%s363 + $0x78] sm:$0xff]
        %v734 = vpack.c.bf16 %v719, %v718
        %v735 = vpack.c.bf16 %v721, %v720
        %v736 = vpack.c.bf16 %v723, %v722
        %v737 = vpack.c.bf16 %v725, %v724
        %v738 = vpack.c.bf16 %v727, %v726
        %v739 = vpack.c.bf16 %v729, %v728
        %v740 = vpack.c.bf16 %v731, %v730
        %v741 = vpack.c.bf16 %v733, %v732
        %v742 = vld [vmem:[#allocation10] sm:$0xf]
        %v743 = vld [vmem:[#allocation10 + $0x4] sm:$0xf]
        %v744 = vld [vmem:[#allocation10 + $0x8] sm:$0xf]
        %v745 = vld [vmem:[#allocation10 + $0xc] sm:$0xf]
        %v746 = vld [vmem:[#allocation10 + $0x10] sm:$0xf]
        %v747 = vld [vmem:[#allocation10 + $0x14] sm:$0xf]
        %v748 = vld [vmem:[#allocation10 + $0x18] sm:$0xf]
        %v749 = vld [vmem:[#allocation10 + $0x1c] sm:$0xf]
        %v750 = vld [vmem:[#allocation10 + $0x20] sm:$0xf]
        %v751 = vld [vmem:[#allocation10 + $0x24] sm:$0xf]
        %v752 = vld [vmem:[#allocation10 + $0x28] sm:$0xf]
        %v753 = vld [vmem:[#allocation10 + $0x2c] sm:$0xf]
        %v754 = vld [vmem:[#allocation10 + $0x30] sm:$0xf]
        %v755 = vld [vmem:[#allocation10 + $0x34] sm:$0xf]
        %v756 = vld [vmem:[#allocation10 + $0x38] sm:$0xf]
        %v757 = vld [vmem:[#allocation10 + $0x3c] sm:$0xf]
        %v758 = vld [vmem:[%s7] sm:$0x1]
        %v760 = vperm.slane %v758, 0
        %v778 = vunpack.c.l.b16 %v742
        %v779 = vunpack.c.l.b16 %v743
        %v780 = vunpack.c.l.b16 %v744
        %v781 = vunpack.c.l.b16 %v745
        %v782 = vunpack.c.l.b16 %v746
        %v783 = vunpack.c.l.b16 %v747
        %v784 = vunpack.c.l.b16 %v748
        %v785 = vunpack.c.l.b16 %v749
        %v786 = vunpack.c.l.b16 %v750
        %v787 = vunpack.c.l.b16 %v751
        %v788 = vunpack.c.l.b16 %v752
        %v789 = vunpack.c.l.b16 %v753
        %v790 = vunpack.c.l.b16 %v754
        %v791 = vunpack.c.l.b16 %v755
        %v792 = vunpack.c.l.b16 %v756
        %v793 = vunpack.c.l.b16 %v757
        %v794 = vpack.c.b16 %v779, %v778
        %v795 = vpack.c.b16 %v781, %v780
        %v796 = vpack.c.b16 %v783, %v782
        %v797 = vpack.c.b16 %v785, %v784
        %v798 = vpack.c.b16 %v787, %v786
        %v799 = vpack.c.b16 %v789, %v788
        %v800 = vpack.c.b16 %v791, %v790
        %v801 = vpack.c.b16 %v793, %v792
        %810 = vmatpush.bf16.msra.mxu0 %v801
        %811 = vmatpush.bf16.msra.mxu0 %v800
        %812 = vmatpush.bf16.msra.mxu0 %v799
        %813 = vmatpush.bf16.msra.mxu0 %v798
        %814 = vmatpush.bf16.msra.mxu0 %v797
        %815 = vmatpush.bf16.msra.mxu0 %v796
        %816 = vmatpush.bf16.msra.mxu0 %v795
        %817 = vmatpush.bf16.msra.mxu0 %v794
        %818 = vmatmul.bf16.gmra.mxu0 %v734
        %v819 = vpop.f32.mrf.mxu0
        %v820 = vadd.f32 %v760, %v819
        %v821 = vpop.f32.mrf.mxu0
        %v822 = vadd.f32 %v760, %v821
        %823 = vmatmul.bf16.gmra.mxu0 %v735
        %v824 = vpop.f32.mrf.mxu0
        %v825 = vadd.f32 %v760, %v824
        %v826 = vpop.f32.mrf.mxu0
        %v827 = vadd.f32 %v760, %v826
        %828 = vmatmul.bf16.gmra.mxu0 %v736
        %v829 = vpop.f32.mrf.mxu0
        %v830 = vadd.f32 %v760, %v829
        %v831 = vpop.f32.mrf.mxu0
        %v832 = vadd.f32 %v760, %v831
        %833 = vmatmul.bf16.gmra.mxu0 %v737
        %v834 = vpop.f32.mrf.mxu0
        %v835 = vadd.f32 %v760, %v834
        %v836 = vpop.f32.mrf.mxu0
        %v837 = vadd.f32 %v760, %v836
        %838 = vmatmul.bf16.gmra.mxu0 %v738
        %v839 = vpop.f32.mrf.mxu0
        %v840 = vadd.f32 %v760, %v839
        %v841 = vpop.f32.mrf.mxu0
        %v842 = vadd.f32 %v760, %v841
        %843 = vmatmul.bf16.gmra.mxu0 %v739
        %v844 = vpop.f32.mrf.mxu0
        %v845 = vadd.f32 %v760, %v844
        %v846 = vpop.f32.mrf.mxu0
        %v847 = vadd.f32 %v760, %v846
        %848 = vmatmul.bf16.gmra.mxu0 %v740
        %v849 = vpop.f32.mrf.mxu0
        %v850 = vadd.f32 %v760, %v849
        %v851 = vpop.f32.mrf.mxu0
        %v852 = vadd.f32 %v760, %v851
        %853 = vmatmul.bf16.gmra.mxu0 %v741
        %v854 = vpop.f32.mrf.mxu0
        %v855 = vadd.f32 %v760, %v854
        %v856 = vpop.f32.mrf.mxu0
        %v857 = vadd.f32 %v760, %v856
        %858 = vdwg.mxu0
        %v859 = vsub.f32 0.0, %v820
        %v860 = vsub.f32 0.0, %v822
        %v861 = vsub.f32 0.0, %v825
        %v862 = vsub.f32 0.0, %v827
        %v863 = vsub.f32 0.0, %v830
        %v864 = vsub.f32 0.0, %v832
        %v865 = vsub.f32 0.0, %v835
        %v866 = vsub.f32 0.0, %v837
        %v867 = vsub.f32 0.0, %v840
        %v868 = vsub.f32 0.0, %v842
        %v869 = vsub.f32 0.0, %v845
        %v870 = vsub.f32 0.0, %v847
        %v871 = vsub.f32 0.0, %v850
        %v872 = vsub.f32 0.0, %v852
        %v873 = vsub.f32 0.0, %v855
        %v874 = vsub.f32 0.0, %v857
        %v875 = vmul.f32 %v859, 1.442695
        %v876 = vpow.pop %v875
        %v877 = vmul.f32 %v860, 1.442695
        %v878 = vpow.pop %v877
        %v879 = vmul.f32 %v861, 1.442695
        %v880 = vpow.pop %v879
        %v881 = vmul.f32 %v862, 1.442695
        %v882 = vpow.pop %v881
        %v883 = vmul.f32 %v863, 1.442695
        %v884 = vpow.pop %v883
        %v885 = vmul.f32 %v864, 1.442695
        %v886 = vpow.pop %v885
        %v887 = vmul.f32 %v865, 1.442695
        %v888 = vpow.pop %v887
        %v889 = vmul.f32 %v866, 1.442695
        %v890 = vpow.pop %v889
        %v891 = vmul.f32 %v867, 1.442695
        %v892 = vpow.pop %v891
        %v893 = vmul.f32 %v868, 1.442695
        %v894 = vpow.pop %v893
        %v895 = vmul.f32 %v869, 1.442695
        %v896 = vpow.pop %v895
        %v897 = vmul.f32 %v870, 1.442695
        %v898 = vpow.pop %v897
        %v899 = vmul.f32 %v871, 1.442695
        %v900 = vpow.pop %v899
        %v901 = vmul.f32 %v872, 1.442695
        %v902 = vpow.pop %v901
        %v903 = vmul.f32 %v873, 1.442695
        %v904 = vpow.pop %v903
        %v905 = vmul.f32 %v874, 1.442695
        %v906 = vpow.pop %v905
        %v907 = vadd.f32 %v876, 1.0
        %v908 = vadd.f32 %v878, 1.0
        %v909 = vadd.f32 %v880, 1.0
        %v910 = vadd.f32 %v882, 1.0
        %v911 = vadd.f32 %v884, 1.0
        %v912 = vadd.f32 %v886, 1.0
        %v913 = vadd.f32 %v888, 1.0
        %v914 = vadd.f32 %v890, 1.0
        %v915 = vadd.f32 %v892, 1.0
        %v916 = vadd.f32 %v894, 1.0
        %v917 = vadd.f32 %v896, 1.0
        %v918 = vadd.f32 %v898, 1.0
        %v919 = vadd.f32 %v900, 1.0
        %v920 = vadd.f32 %v902, 1.0
        %v921 = vadd.f32 %v904, 1.0
        %v922 = vadd.f32 %v906, 1.0
        %v923 = vrcp.pop %v907
        %v924 = vrcp.pop %v908
        %v925 = vrcp.pop %v909
        %v926 = vrcp.pop %v910
        %v927 = vrcp.pop %v911
        %v928 = vrcp.pop %v912
        %v929 = vrcp.pop %v913
        %v930 = vrcp.pop %v914
        %v931 = vrcp.pop %v915
        %v932 = vrcp.pop %v916
        %v933 = vrcp.pop %v917
        %v934 = vrcp.pop %v918
        %v935 = vrcp.pop %v919
        %v936 = vrcp.pop %v920
        %v937 = vrcp.pop %v921
        %v938 = vrcp.pop %v922
        %v939 = vmul.f32 %v679, %v923
        %v940 = vmul.f32 %v681, %v924
        %v941 = vmul.f32 %v684, %v925
        %v942 = vmul.f32 %v686, %v926
        %v943 = vmul.f32 %v689, %v927
        %v944 = vmul.f32 %v691, %v928
        %v945 = vmul.f32 %v694, %v929
        %v946 = vmul.f32 %v696, %v930
        %v947 = vmul.f32 %v699, %v931
        %v948 = vmul.f32 %v701, %v932
        %v949 = vmul.f32 %v704, %v933
        %v950 = vmul.f32 %v706, %v934
        %v951 = vmul.f32 %v709, %v935
        %v952 = vmul.f32 %v711, %v936
        %v953 = vmul.f32 %v714, %v937
        %v954 = vmul.f32 %v716, %v938
        %v955 = vadd.f32 %v420, %v939
        %v956 = vadd.f32 %v421, %v940
        %v957 = vadd.f32 %v422, %v941
        %v958 = vadd.f32 %v423, %v942
        %v959 = vadd.f32 %v424, %v943
        %v960 = vadd.f32 %v425, %v944
        %v961 = vadd.f32 %v426, %v945
        %v962 = vadd.f32 %v427, %v946
        %v963 = vadd.f32 %v428, %v947
        %v964 = vadd.f32 %v429, %v948
        %v965 = vadd.f32 %v430, %v949
        %v966 = vadd.f32 %v431, %v950
        %v967 = vadd.f32 %v432, %v951
        %v968 = vadd.f32 %v433, %v952
        %v969 = vadd.f32 %v434, %v953
        %v970 = vadd.f32 %v435, %v954
        %971 = vst [vmem:[%s416] sm:$0xff] %v955
        %972 = vst [vmem:[%s416 + $0x8] sm:$0xff] %v956
        %973 = vst [vmem:[%s416 + $0x10] sm:$0xff] %v957
        %974 = vst [vmem:[%s416 + $0x18] sm:$0xff] %v958
        %975 = vst [vmem:[%s416 + $0x20] sm:$0xff] %v959
        %976 = vst [vmem:[%s416 + $0x28] sm:$0xff] %v960
        %977 = vst [vmem:[%s416 + $0x30] sm:$0xff] %v961
        %978 = vst [vmem:[%s416 + $0x38] sm:$0xff] %v962
        %979 = vst [vmem:[%s416 + $0x40] sm:$0xff] %v963
        %980 = vst [vmem:[%s416 + $0x48] sm:$0xff] %v964
        %981 = vst [vmem:[%s416 + $0x50] sm:$0xff] %v965
        %982 = vst [vmem:[%s416 + $0x58] sm:$0xff] %v966
        %983 = vst [vmem:[%s416 + $0x60] sm:$0xff] %v967
        %984 = vst [vmem:[%s416 + $0x68] sm:$0xff] %v968
        %985 = vst [vmem:[%s416 + $0x70] sm:$0xff] %v969
        %986 = vst [vmem:[%s416 + $0x78] sm:$0xff] %v970
        %s987 = sand.u32 %s215, 1
        %s988 = scalar_lea.sflag [#allocation4], %s987
        %s989 = sand.u32 %s215, 1
        %s990 = smul.addr %s989, 128
        %s991 = scalar_lea.vmem [#allocation11], %s990
        // Predicated region
        $region73: #{residual_block.1} parent=51 // pred_check
          %p992 = pneg %p225
        $region74: #{residual_block.1} parent=51 // pred_check_branch
          %994 = sbr.rel (%p992) target = $region76
        $region75: #{residual_block.1} parent=51 // pred_region
          %s995 = smul.u32 16, %s29
          %997 = vsyncadd %s988, 0
          %s998 = smul.addr %s995, 8
          %s999 = scalar_lea.hbm %s8, %s998
          %s1000 = sshll.u32 %s991, 4
          %s1001 = int_to_ptr.vmem [resolvable:$true] %s1000
          %s1002 = sshll.u32 %s999, 4
          %s1003 = int_to_ptr.hbm [resolvable:$true] %s1002
          %1008 = dma.vmem_to_hbm [thread:$0]  %s1001, 2048, %s1003, %s988, 128, 128, 8
        $region76: #{residual_block.1} parent=51 // pred_fallthru
          _
      $region52: #{residual_block.1} parent=5 // pred_fallthru
        _
      %p1009 = scmp.le.s32.totalorder 2, %s24
      // Predicated region
      $region77: #{residual_block.1} parent=5 // pred_check
        %p1010 = pneg %p1009
      $region78: #{residual_block.1} parent=5 // pred_check_branch
        %1012 = sbr.rel (%p1010) target = $region80
      $region79: #{residual_block.1} parent=5 // pred_region
        %s1013 = ssub.s32 %s24, 2
        // Predicated region
        $region81: #{residual_block.1} parent=79 // pred_check
          %p1014 = pneg %p231
        $region82: #{residual_block.1} parent=79 // pred_check_branch
          %1016 = sbr.rel (%p1014) target = $region84
        $region83: #{residual_block.1} parent=79 // pred_region
          %s1017 = sand.u32 %s216, 1
          %s1018 = scalar_lea.sflag [#allocation4], %s1017
          %s1019 = sand.u32 %s216, 1
          %s1020 = smul.addr %s1019, 128
          %s1021 = scalar_lea.vmem [#allocation11], %s1020
          %1023 = dma.done %s1018, 2048
        $region84: #{residual_block.1} parent=79 // pred_fallthru
          _
      $region80: #{residual_block.1} parent=5 // pred_fallthru
        _
    $region6: #{residual_block.1} parent=1 // loop_footer
      %s28 = sadd.s32 1, %s24
    $region7: #{residual_block.1} parent=1 // loop_footer_branch
      %23 = sbr.rel target = $region3
    $region8: #{residual_block.1} parent=1 // loop_exit
      _
    %1024 = vsyncpa [#allocation3], 1
    %s1025 = scalar_lea.sflag [#allocation3], 1
    %1026 = vsyncpa %s1025, 1
    %1027 = vsyncpa [#allocation6], 1
    %s1028 = scalar_lea.sflag [#allocation6], 1
    %1029 = vsyncpa %s1028, 1
    %1030 = vsyncpa [#allocation9], 1
    %1031 = vsyncpa [#allocation4], 1
    %s1032 = scalar_lea.sflag [#allocation4], 1
    %1033 = vsyncpa %s1032, 1

</llo_original>
